<compile_context>
chip_gen: v7x
topology: tpu7x:2x2x1
jax: 0.10.0
libtpu: 0.0.40
codegen_flags: <defaults>
</compile_context>

<pallas_src>
import math

import jax
import jax.numpy as jnp
from jax.experimental import pallas as pl
from jax.experimental.pallas import tpu as pltpu

D_MODEL = 512
N_HEADS = 8
D_K = 64          # d_q = d_k = d_v = 64
N_LAYER = 6
LN_EPS = 1e-5     # PyTorch nn.LayerNorm default

VMEM_LIMIT = 48 * 1024 * 1024   # <= ~56 MiB so it is safe on v7x (64 MiB/TC)


# ---------------------------------------------------------------------------
# Row-tiled linear kernel (trans_d input projection): bf16 operands, f32 acc.
# ---------------------------------------------------------------------------
def _linear_kernel(x_ref, w_ref, b_ref, o_ref):
    acc = jnp.dot(x_ref[...].astype(jnp.bfloat16), w_ref[...],
                  preferred_element_type=jnp.float32)
    o_ref[...] = (acc + b_ref[...]).astype(o_ref.dtype)


def pallas_linear(x2d, w_bf16, b2d, tm=512):
    M, K = x2d.shape
    N = w_bf16.shape[1]
    tm = min(tm, M)
    return pl.pallas_call(
        _linear_kernel,
        out_shape=jax.ShapeDtypeStruct((M, N), jnp.float32),
        grid=(pl.cdiv(M, tm),),
        in_specs=[pl.BlockSpec((tm, K), lambda i: (i, 0)),
                  pl.BlockSpec((K, N), lambda i: (0, 0)),
                  pl.BlockSpec((1, N), lambda i: (0, 0))],
        out_specs=pl.BlockSpec((tm, N), lambda i: (i, 0)),
        compiler_params=pltpu.CompilerParams(
            dimension_semantics=("parallel",),
            vmem_limit_bytes=VMEM_LIMIT),
    )(x2d, w_bf16, b2d)


# ---------------------------------------------------------------------------
# Lane-dense prediction head: pred[b, s] = sum_d h[b,s,d] * w[d] + bias
# (VPU multiply + last-axis reduce; avoids an (M,1) masked-store matmul)
# ---------------------------------------------------------------------------
def _predict_kernel(x_ref, w_ref, b_ref, o_ref):
    # x_ref: (1, S, D), w_ref: (1, D), b_ref: (1, 1), o_ref: (1, S)
    p = jnp.sum(x_ref[...] * w_ref[...], axis=-1) + b_ref[...]
    o_ref[...] = p.astype(o_ref.dtype)


def pallas_predict(h, w_row, b11):
    B, S, D = h.shape
    return pl.pallas_call(
        _predict_kernel,
        out_shape=jax.ShapeDtypeStruct((B, S), jnp.float32),
        grid=(B,),
        in_specs=[pl.BlockSpec((1, S, D), lambda b: (b, 0, 0)),
                  pl.BlockSpec((1, D), lambda b: (0, 0)),
                  pl.BlockSpec((1, 1), lambda b: (0, 0))],
        out_specs=pl.BlockSpec((1, S), lambda b: (b, 0)),
        compiler_params=pltpu.CompilerParams(
            dimension_semantics=("parallel",),
            vmem_limit_bytes=VMEM_LIMIT),
    )(h, w_row, b11)


# ---------------------------------------------------------------------------
# Encoder layer: grid = (batch,), all 8 heads unrolled inside the kernel body.
#   fused QKV matmul -> per-head softmax/ctx (ctx staged into a (S,512) bf16
#   scratch slab) -> single K=512 output projection -> residual/LN/FFN/LN.
# ---------------------------------------------------------------------------
def _encoder_layer_kernel(x_ref, wqkv_ref, bqkv_ref, wo_ref, bo_ref,
                          g0_ref, be0_ref, wf_ref, bf_ref, g1_ref, be1_ref,
                          out_ref, attn_ref, ctx_s):
    x = x_ref[0]                                        # (S, D_MODEL) f32
    x16 = x.astype(jnp.bfloat16)

    # One fused QKV matmul: (S, 512) @ (512, 1536), bf16 operands, f32 acc.
    qkv = (jnp.dot(x16, wqkv_ref[...], preferred_element_type=jnp.float32)
           + bqkv_ref[...])
    q_all = qkv[:, :D_MODEL]                    # three lane-aligned 512 slices
    k_all = qkv[:, D_MODEL:2 * D_MODEL]
    v_all = qkv[:, 2 * D_MODEL:]

    scale = 1.0 / math.sqrt(D_K)
    for h in range(N_HEADS):                    # statically unrolled head loop
        lo = h * D_K
        qh = q_all[:, lo:lo + D_K].astype(jnp.bfloat16)
        kh = k_all[:, lo:lo + D_K].astype(jnp.bfloat16)
        vh = v_all[:, lo:lo + D_K].astype(jnp.bfloat16)

        scores = jax.lax.dot_general(
            qh, kh, (((1,), (1,)), ((), ())),
            preferred_element_type=jnp.float32) * scale            # (S, S)
        m = jnp.max(scores, axis=-1, keepdims=True)
        e = jnp.exp(scores - m)
        denom = jnp.sum(e, axis=-1, keepdims=True)
        attn = e * pl.reciprocal(denom, approx=True)               # EUP divide
        attn_ref[0, h] = attn.astype(attn_ref.dtype)               # bf16 map
        ctx = jnp.dot(attn.astype(jnp.bfloat16), vh,
                      preferred_element_type=jnp.float32)          # (S, D_K)
        ctx_s[:, lo:lo + D_K] = ctx.astype(ctx_s.dtype)            # in-place

    # Single K=512 output projection over the contiguous bf16 context slab.
    msa = (jnp.dot(ctx_s[...], wo_ref[...], preferred_element_type=jnp.float32)
           + bo_ref[...])

    # ln0(residual0 + msa)
    h0 = x + msa
    mu0 = jnp.mean(h0, axis=-1, keepdims=True)
    var0 = jnp.mean((h0 - mu0) ** 2, axis=-1, keepdims=True)
    ln0 = (h0 - mu0) * jax.lax.rsqrt(var0 + LN_EPS) * g0_ref[...] + be0_ref[...]

    # row-wise feed-forward: ReLU(Linear(ln0)), bf16 operands / f32 acc
    ffn = jnp.maximum(
        jnp.dot(ln0.astype(jnp.bfloat16), wf_ref[...],
                preferred_element_type=jnp.float32) + bf_ref[...], 0.0)

    # ln1(ffn + residual1)
    h1 = ffn + ln0
    mu1 = jnp.mean(h1, axis=-1, keepdims=True)
    var1 = jnp.mean((h1 - mu1) ** 2, axis=-1, keepdims=True)
    ln1 = (h1 - mu1) * jax.lax.rsqrt(var1 + LN_EPS) * g1_ref[...] + be1_ref[...]

    out_ref[0] = ln1.astype(out_ref.dtype)


def encoder_layer(x, p):
    B, S, D = x.shape
    w_dd = pl.BlockSpec((D, D), lambda b: (0, 0))          # bf16 square weights
    w_qkv = pl.BlockSpec((D, 3 * D), lambda b: (0, 0))     # bf16 fused QKV
    vec = pl.BlockSpec((1, D), lambda b: (0, 0))
    vec3 = pl.BlockSpec((1, 3 * D), lambda b: (0, 0))
    x_spec = pl.BlockSpec((1, S, D), lambda b: (b, 0, 0))
    a_spec = pl.BlockSpec((1, N_HEADS, S, S), lambda b: (b, 0, 0, 0))

    out, attn = pl.pallas_call(
        _encoder_layer_kernel,
        out_shape=(jax.ShapeDtypeStruct((B, S, D), jnp.float32),
                   jax.ShapeDtypeStruct((B, N_HEADS, S, S), jnp.bfloat16)),
        grid=(B,),
        in_specs=[x_spec,
                  w_qkv, vec3,        # fused W_qkv (bf16) / b_qkv (f32)
                  w_dd, vec,          # fc output projection (bf16) / bias
                  vec, vec,           # ln0 gamma / beta
                  w_dd, vec,          # rff linear (bf16) / bias
                  vec, vec],          # ln1 gamma / beta
        out_specs=(x_spec, a_spec),
        scratch_shapes=[pltpu.VMEM((S, D_MODEL), jnp.bfloat16)],   # ctx slab
        compiler_params=pltpu.CompilerParams(
            dimension_semantics=("parallel",),
            vmem_limit_bytes=VMEM_LIMIT),
    )(x, p['wqkv16'], p['bqkv'], p['wo16'], p['bo'], p['g0'], p['be0'],
      p['wf16'], p['bf'], p['g1'], p['be1'])
    return out, attn


# ---------------------------------------------------------------------------
# Full model
# ---------------------------------------------------------------------------
def transformer_forward(x, params):
    B, S, d_data = x.shape
    h = pallas_linear(x.reshape(B * S, d_data),
                      params['w_in16'], params['b_in']).reshape(B, S, D_MODEL)
    attns = []
    for lp in params['layers']:
        h, attn = encoder_layer(h, lp)
        attns.append(attn)
    pred = pallas_predict(h, params['w_pred'], params['b_pred'])
    return pred, attns


# ---------------------------------------------------------------------------
# Deterministic parameter construction (PyTorch-Linear-style uniform init).
# f32 masters are kept for the reference; bf16 copies are pre-cast on the host
# and fed to the kernels' MXU matmuls.
# ---------------------------------------------------------------------------
def _init_linear(key, fan_in, fan_out):
    k1, k2 = jax.random.split(key)
    bound = 1.0 / math.sqrt(fan_in)
    w = jax.random.uniform(k1, (fan_in, fan_out), jnp.float32, -bound, bound)
    b = jax.random.uniform(k2, (1, fan_out), jnp.float32, -bound, bound)
    return w, b


def init_params(key, d_data):
    keys = jax.random.split(key, 2 + N_LAYER)
    w_in, b_in = _init_linear(keys[0], d_data, D_MODEL)
    kw, kb = jax.random.split(keys[1])
    bound = 1.0 / math.sqrt(D_MODEL)
    w_pred = jax.random.uniform(kw, (1, D_MODEL), jnp.float32, -bound, bound)
    b_pred = jax.random.uniform(kb, (1, 1), jnp.float32, -bound, bound)
    layers = []
    for i in range(N_LAYER):
        lk = jax.random.split(keys[2 + i], 5)
        wq, bq = _init_linear(lk[0], D_MODEL, D_K * N_HEADS)
        wk, bk = _init_linear(lk[1], D_MODEL, D_K * N_HEADS)
        wv, bv = _init_linear(lk[2], D_MODEL, D_K * N_HEADS)
        wo, bo = _init_linear(lk[3], D_K * N_HEADS, D_MODEL)
        wf, bf = _init_linear(lk[4], D_MODEL, D_MODEL)
        wqkv = jnp.concatenate([wq, wk, wv], axis=1)    # (512, 1536)
        bqkv = jnp.concatenate([bq, bk, bv], axis=1)    # (1, 1536)
        layers.append(dict(
            wqkv=wqkv, bqkv=bqkv, wo=wo, bo=bo, wf=wf, bf=bf,
            wqkv16=wqkv.astype(jnp.bfloat16),
            wo16=wo.astype(jnp.bfloat16),
            wf16=wf.astype(jnp.bfloat16),
            g0=jnp.ones((1, D_MODEL), jnp.float32),
            be0=jnp.zeros((1, D_MODEL), jnp.float32),
            g1=jnp.ones((1, D_MODEL), jnp.float32),
            be1=jnp.zeros((1, D_MODEL), jnp.float32)))
    return dict(w_in=w_in, b_in=b_in, w_in16=w_in.astype(jnp.bfloat16),
                w_pred=w_pred, b_pred=b_pred, layers=layers)


# ---------------------------------------------------------------------------
# Pure-JAX f32 reference (mirrors the PyTorch forward) for a correctness check
# ---------------------------------------------------------------------------
def _layernorm_ref(x, g, b):
    mu = jnp.mean(x, axis=-1, keepdims=True)
    var = jnp.mean((x - mu) ** 2, axis=-1, keepdims=True)
    return (x - mu) * jax.lax.rsqrt(var + LN_EPS) * g + b


def ref_forward(x, params):
    B, S, _ = x.shape
    h = x @ params['w_in'] + params['b_in']
    attns = []
    for p in params['layers']:
        qkv = h @ p['wqkv'] + p['bqkv']
        q = qkv[..., :D_MODEL].reshape(B, S, N_HEADS, D_K).transpose(0, 2, 1, 3)
        k = qkv[..., D_MODEL:2 * D_MODEL].reshape(B, S, N_HEADS, D_K).transpose(0, 2, 1, 3)
        v = qkv[..., 2 * D_MODEL:].reshape(B, S, N_HEADS, D_K).transpose(0, 2, 1, 3)
        scores = jnp.einsum('bhqd,bhkd->bhqk', q, k) / math.sqrt(D_K)
        attn = jax.nn.softmax(scores, axis=-1)
        attns.append(attn)
        ctx = jnp.einsum('bhqk,bhkd->bhqd', attn, v)
        ctx = ctx.transpose(0, 2, 1, 3).reshape(B, S, D_K * N_HEADS)
        msa = ctx @ p['wo'] + p['bo']
        ln0 = _layernorm_ref(h + msa, p['g0'], p['be0'])
        ffn = jnp.maximum(ln0 @ p['wf'] + p['bf'], 0.0)
        h = _layernorm_ref(ffn + ln0, p['g1'], p['be1'])
    pred = jnp.sum(h * params['w_pred'][0], axis=-1) + params['b_pred'][0, 0]
    return pred, attns


if __name__ == "__main__":
    B, S, D_DATA = 2, 8, 32
    key = jax.random.PRNGKey(0)
    kx, kp = jax.random.split(key)
    x = jax.random.normal(kx, (B, S, D_DATA), jnp.float32)
    params = init_params(kp, D_DATA)

    pred, attns = transformer_forward(x, params)
    pred = jax.block_until_ready(pred)
    attns = [jax.block_until_ready(a) for a in attns]

    pred_ref, attns_ref = ref_forward(x, params)
    assert pred.shape == (B, S)
    assert all(a.shape == (B, N_HEADS, S, S) for a in attns)

    # bf16 MXU operands / bf16 attention maps vs. the pure-f32 reference:
    pred_err = float(jnp.max(jnp.abs(pred - pred_ref)))
    assert jnp.allclose(pred, pred_ref, atol=2e-2, rtol=2e-2), pred_err
    for a, ar in zip(attns, attns_ref):
        a32 = a.astype(jnp.float32)
        attn_err = float(jnp.max(jnp.abs(a32 - ar)))
        assert jnp.allclose(a32, ar, atol=1e-2, rtol=1e-2), attn_err

    print("KERNEL_OK")
</pallas_src>

<mosaic_0001>
module attributes {stable_mosaic.version = 11 : i64} {
  func.func @_linear_kernel(%arg0: i32, %arg1: memref<16x32xf32, #tpu.memory_space<vmem>>, %arg2: memref<32x512xbf16, #tpu.memory_space<vmem>>, %arg3: memref<1x512xf32, #tpu.memory_space<vmem>>, %arg4: memref<16x512xf32, #tpu.memory_space<vmem>>) attributes {dimension_semantics = [#tpu.dimension_semantics<parallel>], iteration_bounds = array<i64: 1>, scalar_prefetch = 0 : i64, scratch_operands = 0 : i64, tpu.core_type = #tpu.core_type<tc>, window_params = [{transform_indices = @transform_0, window_bounds = array<i64: 16, 32>}, {pipeline_mode = #tpu.pipeline_mode<synchronous>, transform_indices = @transform_1, window_bounds = array<i64: 32, 512>}, {pipeline_mode = #tpu.pipeline_mode<synchronous>, transform_indices = @transform_2, window_bounds = array<i64: 1, 512>}, {transform_indices = @transform_3, window_bounds = array<i64: 16, 512>}]} {
    %c0 = arith.constant 0 : index
    %c0_0 = arith.constant 0 : index
    %0 = vector.load %arg1[%c0, %c0_0] : memref<16x32xf32, #tpu.memory_space<vmem>>, vector<16x32xf32>
    %1 = arith.truncf %0 : vector<16x32xf32> to vector<16x32xbf16>
    %c0_1 = arith.constant 0 : index
    %c0_2 = arith.constant 0 : index
    %2 = vector.load %arg2[%c0_1, %c0_2] : memref<32x512xbf16, #tpu.memory_space<vmem>>, vector<32x512xbf16>
    %cst = arith.constant dense<0.000000e+00> : vector<16x512xf32>
    %3 = tpu.matmul %1, %2, %cst {dimension_numbers = #tpu.dot_dimension_numbers<[1], [0], [0], [1], [0, 0, 1, 1], [], []>} : vector<16x32xbf16>, vector<32x512xbf16>, vector<16x512xf32> -> vector<16x512xf32>
    %c0_3 = arith.constant 0 : index
    %c0_4 = arith.constant 0 : index
    %4 = vector.load %arg3[%c0_3, %c0_4] : memref<1x512xf32, #tpu.memory_space<vmem>>, vector<1x512xf32>
    %5 = vector.broadcast %4 : vector<1x512xf32> to vector<16x512xf32>
    %6 = arith.addf %3, %5 : vector<16x512xf32>
    %c0_5 = arith.constant 0 : index
    %c0_6 = arith.constant 0 : index
    %7 = vector.load %arg4[%c0_5, %c0_6] : memref<16x512xf32, #tpu.memory_space<vmem>>, vector<16x512xf32>
    tpu.vector_store %arg4[%c0_5, %c0_6], %6 {strides = array<i32>} : memref<16x512xf32, #tpu.memory_space<vmem>>, vector<16x512xf32>,
    return
  }
  func.func @transform_0(%arg0: i32) -> (i32, i32) {
    %c0_i32 = arith.constant 0 : i32
    %c0_i32_0 = arith.constant 0 : i32
    return %arg0, %c0_i32 : i32, i32
  }
  func.func @transform_1(%arg0: i32) -> (i32, i32) {
    %c0_i32 = arith.constant 0 : i32
    %c0_i32_0 = arith.constant 0 : i32
    %c0_i32_1 = arith.constant 0 : i32
    return %c0_i32, %c0_i32_0 : i32, i32
  }
  func.func @transform_2(%arg0: i32) -> (i32, i32) {
    %c0_i32 = arith.constant 0 : i32
    %c0_i32_0 = arith.constant 0 : i32
    %c0_i32_1 = arith.constant 0 : i32
    return %c0_i32, %c0_i32_0 : i32, i32
  }
  func.func @transform_3(%arg0: i32) -> (i32, i32) {
    %c0_i32 = arith.constant 0 : i32
    %c0_i32_0 = arith.constant 0 : i32
    return %arg0, %c0_i32 : i32, i32
  }
}

</mosaic_0001>

<llo_original>
// kernel: tpu_custom_call.1
$region0: #{tpu_custom_call.1}
  #allocation0 [shape = 'u32[]', space=smem, size = 0x4, offset = 0x4, fixed_abs, tag = 'smem constant byte address 0x4 - core index']
  #allocation1 [shape = 'u32[144,128]{1,0:T(1,128)}', space=vmem, size = 0x12000, scoped, tag = 'internal scratch']
  %s0 = inlined_call_operand.hbm [shape: f32[16,32], index: 0, kind: input, shape index: {}]
  %s1 = inlined_call_operand.hbm [shape: bf16[32,512], index: 1, kind: input, shape index: {}]
  %s2 = inlined_call_operand.vmem [shape: f32[1,512], index: 2, kind: input, shape index: {}]
  %s3 = inlined_call_operand.hbm [shape: f32[16,512], index: 3, kind: output, shape index: {}]
  %s4 = sld [smem:[#allocation0]]
  $region30: #{tpu_custom_call.1} parent=0
    _
  %s6 = ssub.s32 1, %s4
  %s7 = scalar_select 0, %s6, %s4
  $region1: #{tpu_custom_call.1} parent=0
    #allocation2 [shape = 'u8[8192]{0}', space=vmem, size = 0x2000, scoped, tag = 'input window, operand 0, single buffered']
    #allocation3 [shape = 's32[1]{0}', space=sflag, size = 0x4, scoped, tag = 'scoped memory for tpu_custom_call.1']
    #allocation4 [shape = 's32[1]{0}', space=sflag, size = 0x4, scoped, tag = 'scoped memory for tpu_custom_call.1']
    #allocation5 [shape = 'u8[32768]{0}', space=vmem, size = 0x8000, scoped, tag = 'input window, operand 1, single buffered']
    #allocation6 [shape = 's32[1]{0}', space=sflag, size = 0x4, scoped, tag = 'scoped memory for tpu_custom_call.1']
    #allocation7 [shape = 'u8[32768]{0}', space=vmem, size = 0x8000, scoped, tag = 'output window, operand 0, single buffered']
    %8 = vsyncpa [#allocation3], 0
    %9 = vsyncpa [#allocation6], 0
    %10 = vsyncpa [#allocation4], 0
    // Predicated region
    $region2: #{tpu_custom_call.1} parent=1 // pred_check
      _
    $region3: #{tpu_custom_call.1} parent=1 // pred_check_branch
      %12 = sbr.rel (0) target = $region5
    $region4: #{tpu_custom_call.1} parent=1 // pred_region
      %s14 = ssub.s32 256, 256
      %15 = vsyncadd [#allocation3], %s14
      %s16 = sshll.u32 [#allocation2], 4
      %s17 = int_to_ptr.vmem [resolvable:$true] %s16
      %22 = dma.hbm_to_vmem [thread:$0]  %s0, 256, %s17, [#allocation3], 128, 128, 8
    $region5: #{tpu_custom_call.1} parent=1 // pred_fallthru
      _
    // Predicated region
    $region6: #{tpu_custom_call.1} parent=1 // pred_check
      _
    $region7: #{tpu_custom_call.1} parent=1 // pred_check_branch
      %24 = sbr.rel (0) target = $region9
    $region8: #{tpu_custom_call.1} parent=1 // pred_region
      %s26 = ssub.s32 1024, 1024
      %27 = vsyncadd [#allocation6], %s26
      %s28 = sshll.u32 [#allocation5], 4
      %s29 = int_to_ptr.vmem [resolvable:$true] %s28
      %34 = dma.hbm_to_vmem [thread:$0]  %s1, 1024, %s29, [#allocation6], 256, 256, 16
    $region9: #{tpu_custom_call.1} parent=1 // pred_fallthru
      _
    // Predicated region
    $region10: #{tpu_custom_call.1} parent=1 // pred_check
      _
    $region11: #{tpu_custom_call.1} parent=1 // pred_check_branch
      %36 = sbr.rel (0) target = $region13
    $region12: #{tpu_custom_call.1} parent=1 // pred_region
      _
    $region13: #{tpu_custom_call.1} parent=1 // pred_fallthru
      _
    // Predicated region
    $region14: #{tpu_custom_call.1} parent=1 // pred_check
      _
    $region15: #{tpu_custom_call.1} parent=1 // pred_check_branch
      %38 = sbr.rel (0) target = $region17
    $region16: #{tpu_custom_call.1} parent=1 // pred_region
      %39 = dma.done [#allocation3], 256
    $region17: #{tpu_custom_call.1} parent=1 // pred_fallthru
      _
    // Predicated region
    $region18: #{tpu_custom_call.1} parent=1 // pred_check
      _
    $region19: #{tpu_custom_call.1} parent=1 // pred_check_branch
      %41 = sbr.rel (0) target = $region21
    $region20: #{tpu_custom_call.1} parent=1 // pred_region
      %42 = dma.done [#allocation6], 1024
    $region21: #{tpu_custom_call.1} parent=1 // pred_fallthru
      _
    %v44 = vld [vmem:[#allocation2] sm:$0xff]
    %v45 = vld [vmem:[#allocation2 + $0x8] sm:$0xff]
    %v46 = vpack.c.bf16 %v45, %v44
    %v47 = vld [vmem:[#allocation5] sm:$0xff]
    %v48 = vld [vmem:[#allocation5 + $0x8] sm:$0xff]
    %v49 = vld [vmem:[#allocation5 + $0x10] sm:$0xff]
    %v50 = vld [vmem:[#allocation5 + $0x18] sm:$0xff]
    %v51 = vld [vmem:[#allocation5 + $0x20] sm:$0xff]
    %v52 = vld [vmem:[#allocation5 + $0x28] sm:$0xff]
    %v53 = vld [vmem:[#allocation5 + $0x30] sm:$0xff]
    %v54 = vld [vmem:[#allocation5 + $0x38] sm:$0xff]
    %v55 = vld [vmem:[%s2] sm:$0xf]
    %v57 = vlaneseq
    %v58 = vshrl.u32 %v57, 7
    %v59 = vsub.s32 0, %v58
    %v60 = vrot.slane %v55, %v59
    %v61 = vlaneseq
    %v62 = vshrl.u32 %v61, 7
    %v63 = vsub.s32 1, %v62
    %v64 = vrot.slane %v55, %v63
    %v65 = vlaneseq
    %v66 = vshrl.u32 %v65, 7
    %v67 = vsub.s32 2, %v66
    %v68 = vrot.slane %v55, %v67
    %v69 = vlaneseq
    %v70 = vshrl.u32 %v69, 7
    %v71 = vsub.s32 3, %v70
    %v72 = vrot.slane %v55, %v71
    %v85 = vunpack.c.l.b16 %v47
    %v86 = vunpack.c.h.b16 %v47
    %v87 = vunpack.c.l.b16 %v48
    %v88 = vunpack.c.h.b16 %v48
    %v89 = vunpack.c.l.b16 %v49
    %v90 = vunpack.c.h.b16 %v49
    %v91 = vunpack.c.l.b16 %v50
    %v92 = vunpack.c.h.b16 %v50
    %v93 = vunpack.c.l.b16 %v51
    %v94 = vunpack.c.h.b16 %v51
    %v95 = vunpack.c.l.b16 %v52
    %v96 = vunpack.c.h.b16 %v52
    %v97 = vunpack.c.l.b16 %v53
    %v98 = vunpack.c.h.b16 %v53
    %v99 = vunpack.c.l.b16 %v54
    %v100 = vunpack.c.h.b16 %v54
    %v101 = vpack.c.b16 %v89, %v85
    %v102 = vpack.c.b16 %v90, %v86
    %v103 = vpack.c.b16 %v91, %v87
    %v104 = vpack.c.b16 %v92, %v88
    %v105 = vpack.c.b16 %v97, %v93
    %v106 = vpack.c.b16 %v98, %v94
    %v107 = vpack.c.b16 %v99, %v95
    %v108 = vpack.c.b16 %v100, %v96
    %vm117 = vcmask 261120
    %v119 = vsel %vm117, %v46, 0
    %121 = vmatprep.subr.bf16.mxu0 %v102
    %122 = vmatpush1.bf16.msra.mxu0 %v101
    %123 = vmatprep.subr.bf16.mxu0 %v106
    %124 = vmatpush1.bf16.msra.mxu0 %v105
    %125 = vmatprep.subr.bf16.mxu0 0
    %126 = vmatpush1.bf16.msra.mxu0 0
    %127 = vmatprep.subr.bf16.mxu0 0
    %128 = vmatpush1.bf16.msra.mxu0 0
    %129 = vmatprep.subr.bf16.mxu0 0
    %130 = vmatpush1.bf16.msra.mxu0 0
    %131 = vmatprep.subr.bf16.mxu0 0
    %132 = vmatpush1.bf16.msra.mxu0 0
    %133 = vmatprep.subr.bf16.mxu0 0
    %134 = vmatpush1.bf16.msra.mxu0 0
    %135 = vmatprep.subr.bf16.mxu0 0
    %136 = vmatpush1.bf16.msra.mxu0 0
    %137 = vmatprep.subr.bf16.mxu0 0
    %138 = vmatpush1.bf16.msra.mxu0 0
    %139 = vmatprep.subr.bf16.mxu0 0
    %140 = vmatpush1.bf16.msra.mxu0 0
    %141 = vmatprep.subr.bf16.mxu0 0
    %142 = vmatpush1.bf16.msra.mxu0 0
    %143 = vmatprep.subr.bf16.mxu0 0
    %144 = vmatpush1.bf16.msra.mxu0 0
    %145 = vmatprep.subr.bf16.mxu0 0
    %146 = vmatpush1.bf16.msra.mxu0 0
    %147 = vmatprep.subr.bf16.mxu0 0
    %148 = vmatpush1.bf16.msra.mxu0 0
    %149 = vmatprep.subr.bf16.mxu0 0
    %150 = vmatpush1.bf16.msra.mxu0 0
    %151 = vmatprep.subr.bf16.mxu0 0
    %152 = vmatpush1.bf16.msra.mxu0 0
    %153 = vmatprep.mubr.bf16.mxu0 0
    %154 = vmatmul.mubr.bf16.gmra.mrb[0].mxu0 %v119
    %v155 = vpop.f32.mrb[0].mxu0
    %v156 = vadd.f32 %v60, %v155
    %v157 = vpop.f32.mrb[0].mxu0
    %v158 = vadd.f32 %v64, %v157
    %v159 = vpop.f32.mrb[0].mxu0
    %v160 = vadd.f32 %v60, %v159
    %v161 = vpop.f32.mrb[0].mxu0
    %v162 = vadd.f32 %v64, %v161
    %163 = vdwg.mxu0
    %164 = vmatprep.subr.bf16.mxu0 %v104
    %165 = vmatpush1.bf16.msra.mxu0 %v103
    %166 = vmatprep.subr.bf16.mxu0 %v108
    %167 = vmatpush1.bf16.msra.mxu0 %v107
    %168 = vmatprep.subr.bf16.mxu0 0
    %169 = vmatpush1.bf16.msra.mxu0 0
    %170 = vmatprep.subr.bf16.mxu0 0
    %171 = vmatpush1.bf16.msra.mxu0 0
    %172 = vmatprep.subr.bf16.mxu0 0
    %173 = vmatpush1.bf16.msra.mxu0 0
    %174 = vmatprep.subr.bf16.mxu0 0
    %175 = vmatpush1.bf16.msra.mxu0 0
    %176 = vmatprep.subr.bf16.mxu0 0
    %177 = vmatpush1.bf16.msra.mxu0 0
    %178 = vmatprep.subr.bf16.mxu0 0
    %179 = vmatpush1.bf16.msra.mxu0 0
    %180 = vmatprep.subr.bf16.mxu0 0
    %181 = vmatpush1.bf16.msra.mxu0 0
    %182 = vmatprep.subr.bf16.mxu0 0
    %183 = vmatpush1.bf16.msra.mxu0 0
    %184 = vmatprep.subr.bf16.mxu0 0
    %185 = vmatpush1.bf16.msra.mxu0 0
    %186 = vmatprep.subr.bf16.mxu0 0
    %187 = vmatpush1.bf16.msra.mxu0 0
    %188 = vmatprep.subr.bf16.mxu0 0
    %189 = vmatpush1.bf16.msra.mxu0 0
    %190 = vmatprep.subr.bf16.mxu0 0
    %191 = vmatpush1.bf16.msra.mxu0 0
    %192 = vmatprep.subr.bf16.mxu0 0
    %193 = vmatpush1.bf16.msra.mxu0 0
    %194 = vmatprep.subr.bf16.mxu0 0
    %195 = vmatpush1.bf16.msra.mxu0 0
    %196 = vmatprep.mubr.bf16.mxu0 0
    %197 = vmatmul.mubr.bf16.gmra.mrb[0].mxu0 %v119
    %v198 = vpop.f32.mrb[0].mxu0
    %v199 = vadd.f32 %v68, %v198
    %v200 = vpop.f32.mrb[0].mxu0
    %v201 = vadd.f32 %v72, %v200
    %v202 = vpop.f32.mrb[0].mxu0
    %v203 = vadd.f32 %v68, %v202
    %v204 = vpop.f32.mrb[0].mxu0
    %v205 = vadd.f32 %v72, %v204
    %206 = vdwg.mxu0
    %207 = vst [vmem:[#allocation7] sm:$0xff] %v156
    %208 = vst [vmem:[#allocation7 + $0x8] sm:$0xff] %v158
    %209 = vst [vmem:[#allocation7 + $0x10] sm:$0xff] %v199
    %210 = vst [vmem:[#allocation7 + $0x18] sm:$0xff] %v201
    %211 = vst [vmem:[#allocation7 + $0x20] sm:$0xff] %v160
    %212 = vst [vmem:[#allocation7 + $0x28] sm:$0xff] %v162
    %213 = vst [vmem:[#allocation7 + $0x30] sm:$0xff] %v203
    %214 = vst [vmem:[#allocation7 + $0x38] sm:$0xff] %v205
    // Predicated region
    $region22: #{tpu_custom_call.1} parent=1 // pred_check
      _
    $region23: #{tpu_custom_call.1} parent=1 // pred_check_branch
      %216 = sbr.rel (0) target = $region25
    $region24: #{tpu_custom_call.1} parent=1 // pred_region
      %s218 = ssub.s32 1024, 1024
      %219 = vsyncadd [#allocation4], %s218
      %s220 = sshll.u32 [#allocation7], 4
      %s221 = int_to_ptr.vmem [resolvable:$true] %s220
      %226 = dma.vmem_to_hbm [thread:$0]  %s221, 1024, %s3, [#allocation4], 512, 512, 32
    $region25: #{tpu_custom_call.1} parent=1 // pred_fallthru
      _
    // Predicated region
    $region26: #{tpu_custom_call.1} parent=1 // pred_check
      _
    $region27: #{tpu_custom_call.1} parent=1 // pred_check_branch
      %228 = sbr.rel (0) target = $region29
    $region28: #{tpu_custom_call.1} parent=1 // pred_region
      %229 = dma.done [#allocation4], 1024
    $region29: #{tpu_custom_call.1} parent=1 // pred_fallthru
      _
    %230 = vsyncpa [#allocation3], 1
    %231 = vsyncpa [#allocation6], 1
    %232 = vsyncpa [#allocation4], 1

</llo_original>
